<compile_context>
chip_gen: v5e
topology: v5e:2x2
jax: 0.10.0
libtpu: 0.0.40
codegen_flags: <defaults>
</compile_context>

<pallas_src>
import jax
import jax.numpy as jnp
from jax import lax
from jax.experimental import pallas as pl
from jax.experimental.pallas import tpu as pltpu

HIDDEN_DIM = 768   # hard-coded in the PyTorch module's process_input
LANE = 128         # TPU lane width; only channel 0 (inside the first slab) is nonzero


def _reward_hidden_kernel(seq_lens_ref, ids_ref, out_ref):
    """One (batch row, seq tile) block of hidden_states.

    seq_lens_ref : (B,) int32 in SMEM (scalar-prefetched attention_mask row sums)
    ids_ref      : (1, TL, 1) int32 tile of input_ids for (batch b, seq-tile t)
    out_ref      : (1, TL, HIDDEN_DIM) float32 output block
    """
    b = pl.program_id(0)
    t = pl.program_id(1)
    tl_ = out_ref.shape[1]

    seq_len = seq_lens_ref[b]

    # Lanes 128..767 are identically zero: one broadcast store, no VALU selects.
    out_ref[0, :, LANE:] = jnp.zeros((tl_, HIDDEN_DIM - LANE), jnp.float32)

    # First 128-lane slab: channel 0 carries float(input_ids) for positions < seq_len.
    pos = t * tl_ + lax.broadcasted_iota(jnp.int32, (tl_, LANE), 0)  # global seq pos
    ch = lax.broadcasted_iota(jnp.int32, (tl_, LANE), 1)             # lane index
    keep = (pos < seq_len) & (ch == 0)                               # (TL, LANE)
    ids_f = ids_ref[0].astype(jnp.float32)                           # (TL, 1) -> lanes
    out_ref[0, :, :LANE] = jnp.where(keep, ids_f, jnp.float32(0.0))


def _choose_seq_tile(L: int) -> int:
    if L <= 1024:
        return L                      # full seq dim: always a legal block shape
    for t in (1024, 512, 256, 128):   # sublane-friendly tiles
        if L % t == 0:
            return t
    return 1024                       # partial last tile handled by Pallas masking


def single_task_reward_forward(input_ids, attention_mask):
    """Pallas forward of SingleTaskRewardModel: returns {'hidden_states': [hs]}."""
    B, L = input_ids.shape
    # (B, L, 1) so the per-step tile is (1, TL, 1): sublane-oriented, constraint-clean.
    ids = input_ids.astype(jnp.int32).reshape(B, L, 1)
    # Per-row seq_len reduced in the wrapper (fused by XLA); fed to SMEM via prefetch.
    seq_lens = jnp.sum(attention_mask.astype(jnp.int32), axis=1)

    tl_ = _choose_seq_tile(L)
    nt = pl.cdiv(L, tl_)

    hidden = pl.pallas_call(
        _reward_hidden_kernel,
        out_shape=jax.ShapeDtypeStruct((B, L, HIDDEN_DIM), jnp.float32),
        grid_spec=pltpu.PrefetchScalarGridSpec(
            num_scalar_prefetch=1,            # seq_lens -> SMEM scalars
            grid=(B, nt),
            in_specs=[
                # one (1, TL, 1) tile of input_ids per grid step
                pl.BlockSpec((1, tl_, 1), lambda b, t, seq_lens: (b, t, 0)),
            ],
            # (1, TL, 768) lane-dense output slab per (batch, seq-tile)
            out_specs=pl.BlockSpec((1, tl_, HIDDEN_DIM),
                                   lambda b, t, seq_lens: (b, t, 0)),
        ),
        compiler_params=pltpu.CompilerParams(
            dimension_semantics=("parallel", "parallel"),
        ),
    )(seq_lens, ids)
    # Mirror the PyTorch return value: AttrDict({'hidden_states': [hidden_states]})
    return {"hidden_states": [hidden]}


if __name__ == "__main__":
    key = jax.random.PRNGKey(0)
    B, L = 2, 8

    k_ids, _ = jax.random.split(key)
    input_ids = jax.random.randint(k_ids, (B, L), minval=1, maxval=100, dtype=jnp.int32)
    # contiguous attention masks with per-row lengths (as a tokenizer would emit)
    lens = jnp.array([5, 8], dtype=jnp.int32)
    attention_mask = (jnp.arange(L)[None, :] < lens[:, None]).astype(jnp.int32)

    out = single_task_reward_forward(input_ids, attention_mask)
    hs = out["hidden_states"][0]
    jax.block_until_ready(hs)

    # Pure-JAX reference check of the forward semantics.
    ref_lens = attention_mask.sum(axis=1)
    ch0 = jnp.where(jnp.arange(L)[None, :] < ref_lens[:, None],
                    input_ids.astype(jnp.float32), 0.0)
    ref = jnp.zeros((B, L, HIDDEN_DIM), jnp.float32).at[:, :, 0].set(ch0)

    assert hs.shape == (B, L, HIDDEN_DIM) and hs.dtype == jnp.float32
    assert jnp.allclose(hs, ref), "mismatch vs reference"
    print("KERNEL_OK")
</pallas_src>

<mosaic_0001>
module attributes {stable_mosaic.version = 11 : i64} {
  func.func @_reward_hidden_kernel(%arg0: i32, %arg1: i32, %arg2: memref<2xi32, #tpu.memory_space<smem>>, %arg3: memref<1x8x1xi32, #tpu.memory_space<vmem>>, %arg4: memref<1x8x768xf32, #tpu.memory_space<vmem>>) attributes {dimension_semantics = [#tpu.dimension_semantics<parallel>, #tpu.dimension_semantics<parallel>], iteration_bounds = array<i64: 2, 1>, scalar_prefetch = 1 : i64, scratch_operands = 0 : i64, tpu.core_type = #tpu.core_type<tc>, window_params = [{transform_indices = @transform_0, window_bounds = array<i64: 1, 8, 1>}, {transform_indices = @transform_1, window_bounds = array<i64: 1, 8, 768>}]} {
    %0 = arith.index_cast %arg0 : i32 to index
    %1 = memref.load %arg2[%0] : memref<2xi32, #tpu.memory_space<smem>>
    %cst = arith.constant 0.000000e+00 : f32
    %2 = vector.broadcast %cst : f32 to vector<8x640xf32>
    %c0 = arith.constant 0 : index
    %c0_0 = arith.constant 0 : index
    %c128 = arith.constant 128 : index
    %3 = vector.load %arg4[%c0, %c0_0, %c128] : memref<1x8x768xf32, #tpu.memory_space<vmem>>, vector<1x8x640xf32>
    %4 = vector.shape_cast %3 : vector<1x8x640xf32> to vector<8x640xf32>
    %5 = vector.shape_cast %2 : vector<8x640xf32> to vector<1x8x640xf32>
    tpu.vector_store %arg4[%c0, %c0_0, %c128], %5 {strides = array<i32>} : memref<1x8x768xf32, #tpu.memory_space<vmem>>, vector<1x8x640xf32>,
    %c8_i32 = arith.constant 8 : i32
    %6 = arith.muli %arg1, %c8_i32 : i32
    %7 = tpu.iota {dimensions = array<i32: 0>} : vector<8x128xi32>
    %8 = vector.broadcast %6 : i32 to vector<8x128xi32>
    %9 = arith.addi %8, %7 : vector<8x128xi32>
    %10 = tpu.iota {dimensions = array<i32: 1>} : vector<8x128xi32>
    %11 = vector.broadcast %1 : i32 to vector<8x128xi32>
    %12 = arith.cmpi slt, %9, %11 : vector<8x128xi32>
    %c0_i32 = arith.constant 0 : i32
    %13 = vector.broadcast %c0_i32 : i32 to vector<8x128xi32>
    %14 = arith.cmpi eq, %10, %13 : vector<8x128xi32>
    %15 = arith.andi %12, %14 : vector<8x128xi1>
    %c0_1 = arith.constant 0 : index
    %c0_2 = arith.constant 0 : index
    %c0_3 = arith.constant 0 : index
    %16 = vector.load %arg3[%c0_1, %c0_2, %c0_3] : memref<1x8x1xi32, #tpu.memory_space<vmem>>, vector<1x8x1xi32>
    %17 = vector.shape_cast %16 : vector<1x8x1xi32> to vector<8x1xi32>
    %18 = arith.sitofp %17 : vector<8x1xi32> to vector<8x1xf32>
    %cst_4 = arith.constant 0.000000e+00 : f32
    %19 = vector.shape_cast %18 : vector<8x1xf32> to vector<8x1xf32>
    %20 = vector.broadcast %19 : vector<8x1xf32> to vector<8x128xf32>
    %21 = vector.broadcast %cst_4 : f32 to vector<8x128xf32>
    %22 = arith.select %15, %20, %21 : vector<8x128xi1>, vector<8x128xf32>
    %c0_5 = arith.constant 0 : index
    %c0_6 = arith.constant 0 : index
    %c0_7 = arith.constant 0 : index
    %23 = vector.load %arg4[%c0_5, %c0_6, %c0_7] : memref<1x8x768xf32, #tpu.memory_space<vmem>>, vector<1x8x128xf32>
    %24 = vector.shape_cast %23 : vector<1x8x128xf32> to vector<8x128xf32>
    %25 = vector.shape_cast %22 : vector<8x128xf32> to vector<1x8x128xf32>
    tpu.vector_store %arg4[%c0_5, %c0_6, %c0_7], %25 {strides = array<i32>} : memref<1x8x768xf32, #tpu.memory_space<vmem>>, vector<1x8x128xf32>,
    return
  }
  func.func @transform_0(%arg0: i32, %arg1: i32, %arg2: memref<2xi32, #tpu.memory_space<smem>>) -> (i32, i32, i32) {
    %c0_i32 = arith.constant 0 : i32
    %c0_i32_0 = arith.constant 0 : i32
    return %arg0, %arg1, %c0_i32 : i32, i32, i32
  }
  func.func @transform_1(%arg0: i32, %arg1: i32, %arg2: memref<2xi32, #tpu.memory_space<smem>>) -> (i32, i32, i32) {
    %c0_i32 = arith.constant 0 : i32
    %c0_i32_0 = arith.constant 0 : i32
    return %arg0, %arg1, %c0_i32 : i32, i32, i32
  }
}

</mosaic_0001>

<llo_original>
// kernel: tpu_custom_call.1
$region0: #{tpu_custom_call.1}
  #allocation0 [shape = 'u32[]', space=smem, size = 0x4, offset = 0x4, fixed_abs, tag = 'smem constant byte address 0x4 - core index']
  #allocation1 [shape = 'u32[72,128]{1,0:T(1,128)}', space=vmem, size = 0x9000, scoped, tag = 'internal scratch']
  #allocation2 [shape = 's32[1]{0}', space=sflag, size = 0x4, scoped, tag = 'scoped memory for tpu_custom_call.1']
  #allocation3 [shape = 'u8[512]{0}', space=smem, size = 0x200, scoped, tag = 'prefetched SMEM operand 0']
  %s0 = inlined_call_operand.vmem [shape: s32[2], index: 0, kind: input, shape index: {}]
  %s1 = inlined_call_operand.vmem [shape: s32[2,8,1], index: 1, kind: input, shape index: {}]
  %s2 = inlined_call_operand.hbm [shape: f32[2,8,768], index: 2, kind: output, shape index: {}]
  %s3 = sld [smem:[#allocation0]]
  $region37: #{tpu_custom_call.1} parent=0
    _
  %s5 = ssub.s32 1, %s3
  %s6 = scalar_select 0, %s5, %s3
  %s8 = sshll.u32 %s0, 4
  %s9 = int_to_ptr.vmem [resolvable:$true] %s8
  %11 = dma.vmem_to_smem %s9, 16, [#allocation3], [#allocation2]
  %13 = dma.done [#allocation2], 16
  %14 = sfence
  $region1: #{tpu_custom_call.1} parent=0
    #allocation4 [shape = 'u8[49152]{0}', space=vmem, size = 0xc000, scoped, tag = 'output window, operand 0']
    #allocation5 [shape = 's32[2]{0}', space=sflag, size = 0x8, scoped, tag = 'scoped memory for tpu_custom_call.1']
    %15 = vsyncpa [#allocation5], 0
    %s16 = scalar_lea.sflag [#allocation5], 1
    %17 = vsyncpa %s16, 0
    loop: start=0, step=1, limit=4
    $region2: #{tpu_custom_call.1} parent=1 // loop_pre_header
      _
    $region3: #{tpu_custom_call.1} parent=1 // loop_header
      %s19 = sphi 0, %s23
      %p20 = scmp.ge.s32.totalorder %s19, 4
      %s26 = sphi 0, %s38
      %s27 = sphi 0, %s34
      %s28 = sphi 0, %s26
      %s29 = sphi 0, %s27
      %s30 = sphi 0, %s28
      %s31 = sphi 0, %s29
      %s43 = sphi 0, %s45
      %s46 = sphi 0, %s43
      %s47 = sphi 0, %s46
      %s63 = sphi 0, %s47
      %s71 = sphi 0, %s73
      %s74 = sphi 0, %s71
      %s75 = sphi 0, %s74
      %s91 = sphi 0, %s75
    $region4: #{tpu_custom_call.1} parent=1 // loop_header_branch
      %22 = sbr.rel (%p20) target = $region8
    $region5: #{tpu_custom_call.1} parent=1 // loop_body
      %s24 = ssub.s32 %s19, 1
      %s25 = ssub.s32 %s19, 2
      %s32 = sadd.s32 1, %s27
      %p33 = scmp.ge.s32.totalorder %s32, 1
      %s34 = scalar_select %p33, 0, %s32
      %s35 = sadd.s32 1, %s26
      %s36 = scalar_select %p33, %s35, %s26
      %p37 = scmp.ge.s32.totalorder %s36, 2
      %s38 = scalar_select %p37, 0, %s36
      %s39 = ssub.s32 %s26, %s38
      %s40 = ssub.s32 %s27, %s34
      %s41 = sor.u32 %s39, %s40
      %p42 = scmp.eq.s32.totalorder %s41, 0
      %s44 = sadd.s32 %s43, 1
      %s45 = scalar_select %p42, %s43, %s44
      %p48 = pneg %p42
      %p49 = scmp.eq.s32.totalorder %s19, 1
      %p50 = por %p48, %p49
      %p51 = scmp.ne.s32.totalorder %s43, %s46
      %p52 = scmp.eq.s32.totalorder %s19, 0
      %p53 = por %p51, %p52
      %p54 = scmp.ne.s32.totalorder %s43, %s46
      %p55 = scmp.eq.s32.totalorder %s24, 1
      %p56 = por %p54, %p55
      %p57 = scmp.ne.s32.totalorder %s46, %s47
      %p58 = scmp.eq.s32.totalorder %s24, 0
      %p59 = por %p57, %p58
      %p60 = scmp.ne.s32.totalorder %s46, %s47
      %p61 = scmp.eq.s32.totalorder %s25, 1
      %p62 = por %p60, %p61
      %p64 = scmp.ne.s32.totalorder %s47, %s63
      %p65 = scmp.eq.s32.totalorder %s25, 0
      %p66 = por %p64, %p65
      %s67 = ssub.s32 %s26, %s38
      %s68 = ssub.s32 %s27, %s34
      %s69 = sor.u32 %s67, %s68
      %p70 = scmp.eq.s32.totalorder %s69, 0
      %s72 = sadd.s32 %s71, 1
      %s73 = scalar_select %p70, %s71, %s72
      %p76 = pneg %p70
      %p77 = scmp.eq.s32.totalorder %s19, 1
      %p78 = por %p76, %p77
      %p79 = scmp.ne.s32.totalorder %s71, %s74
      %p80 = scmp.eq.s32.totalorder %s19, 0
      %p81 = por %p79, %p80
      %p82 = scmp.ne.s32.totalorder %s71, %s74
      %p83 = scmp.eq.s32.totalorder %s24, 1
      %p84 = por %p82, %p83
      %p85 = scmp.ne.s32.totalorder %s74, %s75
      %p86 = scmp.eq.s32.totalorder %s24, 0
      %p87 = por %p85, %p86
      %p88 = scmp.ne.s32.totalorder %s74, %s75
      %p89 = scmp.eq.s32.totalorder %s25, 1
      %p90 = por %p88, %p89
      %p92 = scmp.ne.s32.totalorder %s75, %s91
      %p93 = scmp.eq.s32.totalorder %s25, 0
      %p94 = por %p92, %p93
      %p95 = scmp.le.s32.totalorder 1, %s19
      %p96 = scmp.lt.s32.totalorder %s19, 3
      %p97 = pnand %p95, %p96
      %p98 = pneg %p97
      // Predicated region
      $region9: #{tpu_custom_call.1} parent=5 // pred_check
        _
      $region10: #{tpu_custom_call.1} parent=5 // pred_check_branch
        %100 = sbr.rel (%p97) target = $region12
      $region11: #{tpu_custom_call.1} parent=5 // pred_region
        %s101 = ssub.s32 %s19, 1
      $region12: #{tpu_custom_call.1} parent=5 // pred_fallthru
        _
      %p102 = scmp.lt.s32.totalorder %s19, 2
      // Predicated region
      $region13: #{tpu_custom_call.1} parent=5 // pred_check
        %p103 = pneg %p102
      $region14: #{tpu_custom_call.1} parent=5 // pred_check_branch
        %105 = sbr.rel (%p103) target = $region16
      $region15: #{tpu_custom_call.1} parent=5 // pred_region
        // Predicated region
        $region17: #{tpu_custom_call.1} parent=15 // pred_check
          %p106 = pneg %p53
        $region18: #{tpu_custom_call.1} parent=15 // pred_check_branch
          %108 = sbr.rel (%p106) target = $region20
        $region19: #{tpu_custom_call.1} parent=15 // pred_region
          %p109 = scmp.lt.s32.totalorder %s26, 1
          %s110 = scalar_select %p109, %s26, 1
          %p111 = scmp.lt.s32.totalorder %s27, 0
          %s112 = scalar_select %p111, %s27, 0
          %s113 = sadd.s32 %s112, %s110
          %s114 = smul.addr %s113, 8
          %s115 = scalar_lea.vmem %s1, %s114
        $region20: #{tpu_custom_call.1} parent=15 // pred_fallthru
          _
      $region16: #{tpu_custom_call.1} parent=5 // pred_fallthru
        _
      %p116 = scmp.le.s32.totalorder 1, %s19
      %p117 = scmp.lt.s32.totalorder %s19, 3
      %p118 = pnand %p116, %p117
      %p119 = pneg %p118
      // Predicated region
      $region21: #{tpu_custom_call.1} parent=5 // pred_check
        _
      $region22: #{tpu_custom_call.1} parent=5 // pred_check_branch
        %121 = sbr.rel (%p118) target = $region24
      $region23: #{tpu_custom_call.1} parent=5 // pred_region
        %s122 = ssub.s32 %s19, 1
        %p123 = scmp.lt.s32.totalorder %s28, 1
        %s124 = scalar_select %p123, %s28, 1
        %p125 = scmp.lt.s32.totalorder %s29, 0
        %s126 = scalar_select %p125, %s29, 0
        %s127 = sadd.s32 %s126, %s124
        %s128 = smul.addr %s127, 8
        %s129 = scalar_lea.vmem %s1, %s128
        %p130 = pneg %p59
        %p131 = pneg %p56
        %p132 = pneg %p87
        %p133 = pneg %p84
        %s134 = sand.u32 %s74, 1
        %s135 = scalar_lea.sflag [#allocation5], %s134
        %s136 = sand.u32 %s74, 1
        %s137 = smul.addr %s136, 48
        %s138 = scalar_lea.vmem [#allocation4], %s137
        %p139 = scmp.lt.s32.totalorder %s28, 1
        %s140 = scalar_select %p139, %s28, 1
        %p141 = scmp.lt.s32.totalorder %s29, 0
        %s142 = scalar_select %p141, %s29, 0
        %s143 = sadd.s32 %s142, %s140
        %s144 = smul.addr %s143, 8
        %s145 = scalar_lea.vmem %s1, %s144
        %s146 = sld [smem:[#allocation3 + %s28]]
        %147 = vst [vmem:[%s138 + $0x8] sm:$0xff] 0.0
        %148 = vst [vmem:[%s138 + $0x10] sm:$0xff] 0.0
        %149 = vst [vmem:[%s138 + $0x18] sm:$0xff] 0.0
        %150 = vst [vmem:[%s138 + $0x20] sm:$0xff] 0.0
        %151 = vst [vmem:[%s138 + $0x28] sm:$0xff] 0.0
        %s152 = smul.u32 %s29, 8
        %v153 = vlaneseq
        %v154 = vshrl.u32 %v153, 7
        %v155 = vstv %s152
        %v156 = vadd.s32 %v155, %v154
        %v157 = vlaneseq
        %v158 = vand.u32 %v157, 127
        %v159 = vstv %s146
        %vm160 = vcmp.lt.s32.totalorder %v156, %v159
        %vm161 = vcmp.eq.s32.totalorder %v158, 0
        %vm162 = vmand %vm160, %vm161
        %v163 = vld [vmem:[%s145] sm:$0xff]
        %v164 = vcvt.s32.f32 %v163
        %166 = vset.pattern.permute.xlu0 0
        %167 = vperm.xlu0 %166, %v164
        %v168 = vpop.permute.xlu0 %167
        %v170 = vsel %vm162, %v168, 0.0
        %171 = vst [vmem:[%s138] sm:$0xff] %v170
        %s172 = sand.u32 %s74, 1
        %s173 = scalar_lea.sflag [#allocation5], %s172
        %s174 = sand.u32 %s74, 1
        %s175 = smul.addr %s174, 48
        %s176 = scalar_lea.vmem [#allocation4], %s175
        // Predicated region
        $region25: #{tpu_custom_call.1} parent=23 // pred_check
          %p177 = pneg %p84
        $region26: #{tpu_custom_call.1} parent=23 // pred_check_branch
          %179 = sbr.rel (%p177) target = $region28
        $region27: #{tpu_custom_call.1} parent=23 // pred_region
          %181 = vsyncadd %s173, 0
          %s182 = smul.addr %s29, 6
          %s183 = smul.addr %s28, 6
          %s184 = sadd.s32 %s182, %s183
          %s185 = smul.addr %s184, 8
          %s186 = scalar_lea.hbm %s2, %s185
          %s188 = sshll.u32 %s176, 4
          %s189 = int_to_ptr.vmem [resolvable:$true] %s188
          %s190 = sshll.u32 %s186, 4
          %s191 = int_to_ptr.hbm [resolvable:$true] %s190
          %193 = dma.vmem_to_hbm [thread:$0]  %s189, 768, %s191, %s173
        $region28: #{tpu_custom_call.1} parent=23 // pred_fallthru
          _
      $region24: #{tpu_custom_call.1} parent=5 // pred_fallthru
        _
      %p194 = scmp.le.s32.totalorder 2, %s19
      // Predicated region
      $region29: #{tpu_custom_call.1} parent=5 // pred_check
        %p195 = pneg %p194
      $region30: #{tpu_custom_call.1} parent=5 // pred_check_branch
        %197 = sbr.rel (%p195) target = $region32
      $region31: #{tpu_custom_call.1} parent=5 // pred_region
        %s198 = ssub.s32 %s19, 2
        // Predicated region
        $region33: #{tpu_custom_call.1} parent=31 // pred_check
          %p199 = pneg %p90
        $region34: #{tpu_custom_call.1} parent=31 // pred_check_branch
          %201 = sbr.rel (%p199) target = $region36
        $region35: #{tpu_custom_call.1} parent=31 // pred_region
          %s202 = sand.u32 %s75, 1
          %s203 = scalar_lea.sflag [#allocation5], %s202
          %s204 = sand.u32 %s75, 1
          %s205 = smul.addr %s204, 48
          %s206 = scalar_lea.vmem [#allocation4], %s205
          %208 = dma.done %s203, 768
        $region36: #{tpu_custom_call.1} parent=31 // pred_fallthru
          _
      $region32: #{tpu_custom_call.1} parent=5 // pred_fallthru
        _
    $region6: #{tpu_custom_call.1} parent=1 // loop_footer
      %s23 = sadd.s32 1, %s19
    $region7: #{tpu_custom_call.1} parent=1 // loop_footer_branch
      %18 = sbr.rel target = $region3
    $region8: #{tpu_custom_call.1} parent=1 // loop_exit
      _
    %209 = vsyncpa [#allocation5], 1
    %s210 = scalar_lea.sflag [#allocation5], 1
    %211 = vsyncpa %s210, 1

</llo_original>
